<compile_context>
chip_gen: v5e
topology: v5e:2x2
jax: 0.10.0
libtpu: 0.0.40
codegen_flags: <defaults>
</compile_context>

<pallas_src>
import math
import functools

import jax
import jax.numpy as jnp
from jax import lax
from jax.experimental import pallas as pl
from jax.experimental.pallas import tpu as pltpu

_LN_EPS = 1e-5


def _ln(x, g, b):
    """Row-wise LayerNorm in f32; g/b broadcast as (1, D)."""
    x = x.astype(jnp.float32)
    mean = jnp.mean(x, axis=-1, keepdims=True)
    xc = x - mean
    var = jnp.mean(xc * xc, axis=-1, keepdims=True)
    return xc * lax.rsqrt(var + _LN_EPS) * g + b


# ----------------------- Pallas kernel 1: patch embedding -----------------------

def _patch_embed_kernel(x_ref, w_ref, b_ref, o_ref):
    acc = jnp.dot(x_ref[...].astype(jnp.bfloat16), w_ref[...],
                  preferred_element_type=jnp.float32)
    o_ref[...] = (acc + b_ref[...]).astype(o_ref.dtype)


def patch_embed(patches, w_bf16, b):
    """conv1 (stride == kernel) as one full-M MXU matmul.  patches: (M, K) f32, w: (K, D) bf16."""
    M, K = patches.shape
    N = w_bf16.shape[1]
    return pl.pallas_call(
        _patch_embed_kernel,
        out_shape=jax.ShapeDtypeStruct((M, N), jnp.float32),
        grid=(1,),
        in_specs=[pl.BlockSpec((M, K), lambda i: (0, 0)),
                  pl.BlockSpec((K, N), lambda i: (0, 0)),
                  pl.BlockSpec((1, N), lambda i: (0, 0))],
        out_specs=pl.BlockSpec((M, N), lambda i: (0, 0)),
    )(patches, w_bf16, b.reshape(1, N))


# ----------------------- Pallas kernel 2: fused transformer encoder -----------------------

def _encoder_kernel(xs_ref, lnpre_g_ref, lnpre_b_ref,
                    prompts_ref, ln1_g_ref, ln1_b_ref,
                    w_qkv_ref, b_qkv_ref, w_out_ref, b_out_ref,
                    ln2_g_ref, ln2_b_ref,
                    w_mlp1_ref, b_mlp1_ref, w_mlp2_ref, b_mlp2_ref,
                    lnpost_g_ref, lnpost_b_ref, proj_ref,
                    out_ref, x_scr, *, num_heads, num_prompts):
    """One grid step == one transformer layer; residual stream persists in x_scr (VMEM)."""
    layer = pl.program_id(0)
    n_layers = pl.num_programs(0)
    BT, L, D = xs_ref.shape
    M = BT * L
    H = num_heads
    Dh = D // H
    P = num_prompts

    @pl.when(layer == 0)
    def _init():  # ln_pre applied once to the padded input sequence (prompt slots overwritten later)
        x0 = xs_ref[...].reshape(M, D)
        x_scr[...] = _ln(x0, lnpre_g_ref[...], lnpre_b_ref[...])

    x = x_scr[...]                                     # (M, D) f32 residual stream

    if P > 0:
        # Overwrite rows 1..1+P of every sequence with this layer's raw prompts
        # (equivalent to the PyTorch per-layer insert/remove concat pair).
        x3 = x.reshape(BT, L, D)
        row = lax.broadcasted_iota(jnp.int32, (1, L, 1), 1)
        pmask = (row >= 1) & (row < 1 + P)
        x = jnp.where(pmask, prompts_ref[...], x3).reshape(M, D)

    # ---- x += out_proj(MHA(ln_1(x))) --------------------------------------------------
    y = _ln(x, ln1_g_ref[0], ln1_b_ref[0])
    qkv = jnp.dot(y.astype(jnp.bfloat16), w_qkv_ref[0],
                  preferred_element_type=jnp.float32) + b_qkv_ref[0]      # (M, 3D), scale folded
    qkv3 = qkv.reshape(BT, L, 3 * D)
    heads = []
    for h in range(H):                                 # static unroll over heads (H small)
        q = qkv3[:, :, h * Dh:(h + 1) * Dh].astype(jnp.bfloat16)
        k = qkv3[:, :, D + h * Dh:D + (h + 1) * Dh].astype(jnp.bfloat16)
        v = qkv3[:, :, 2 * D + h * Dh:2 * D + (h + 1) * Dh].astype(jnp.bfloat16)
        s = jnp.einsum('nqc,nkc->nqk', q, k, preferred_element_type=jnp.float32)
        s = s - jnp.max(s, axis=-1, keepdims=True)
        p = jnp.exp(s)
        p = p * pl.reciprocal(jnp.sum(p, axis=-1, keepdims=True), approx=True)   # EUP divide
        heads.append(jnp.einsum('nqk,nkc->nqc', p.astype(jnp.bfloat16), v,
                                preferred_element_type=jnp.float32))
    mix = jnp.concatenate(heads, axis=-1).reshape(M, D)
    x = jnp.dot(mix.astype(jnp.bfloat16), w_out_ref[0],
                preferred_element_type=jnp.float32) + b_out_ref[0] + x

    # ---- x += mlp(ln_2(x)) ------------------------------------------------------------
    y = _ln(x, ln2_g_ref[0], ln2_b_ref[0])
    hdn = jnp.dot(y.astype(jnp.bfloat16), w_mlp1_ref[0],
                  preferred_element_type=jnp.float32) + b_mlp1_ref[0]
    hdn = hdn * jax.nn.sigmoid(1.702 * hdn)            # QuickGELU (f32 VPU/EUP)
    x = jnp.dot(hdn.astype(jnp.bfloat16), w_mlp2_ref[0],
                preferred_element_type=jnp.float32) + b_mlp2_ref[0] + x

    x_scr[...] = x

    @pl.when(layer == n_layers - 1)
    def _epilogue():                                   # ln_post(x[:, 0, :]) @ visual.proj
        cls = x.reshape(BT, L, D)[:, 0, :]             # (BT, D); prompt removal irrelevant, only row 0 used
        yc = _ln(cls, lnpost_g_ref[...], lnpost_b_ref[...])
        out_ref[...] = jnp.dot(yc.astype(jnp.bfloat16), proj_ref[...],
                               preferred_element_type=jnp.float32).astype(out_ref.dtype)


def transformer_encode(params, xs, *, num_heads, num_prompts):
    """xs: (B*T, L, D) padded sequence -> (B*T, output_dim); one pallas_call for all layers."""
    BT, L, D = xs.shape
    st = params['stack']
    n_layers = st['w_qkv_bf16'].shape[0]
    out_dim = params['proj_bf16'].shape[1]

    layer3 = lambda l: (l, 0, 0)
    const2 = lambda l: (0, 0)
    const3 = lambda l: (0, 0, 0)

    kernel = functools.partial(_encoder_kernel, num_heads=num_heads, num_prompts=num_prompts)
    return pl.pallas_call(
        kernel,
        out_shape=jax.ShapeDtypeStruct((BT, out_dim), jnp.float32),
        grid=(n_layers,),
        in_specs=[
            pl.BlockSpec((BT, L, D), const3),              # xs (VMEM-resident, read at step 0)
            pl.BlockSpec((1, D), const2),                  # ln_pre_g
            pl.BlockSpec((1, D), const2),                  # ln_pre_b
            pl.BlockSpec((1, L, D), layer3),               # prompts (padded to L rows, per layer)
            pl.BlockSpec((1, 1, D), layer3),               # ln1_g
            pl.BlockSpec((1, 1, D), layer3),               # ln1_b
            pl.BlockSpec((1, D, 3 * D), layer3),           # w_qkv (bf16, q-scale folded)
            pl.BlockSpec((1, 1, 3 * D), layer3),           # b_qkv
            pl.BlockSpec((1, D, D), layer3),               # w_out (bf16)
            pl.BlockSpec((1, 1, D), layer3),               # b_out
            pl.BlockSpec((1, 1, D), layer3),               # ln2_g
            pl.BlockSpec((1, 1, D), layer3),               # ln2_b
            pl.BlockSpec((1, D, 4 * D), layer3),           # w_mlp1 (bf16)
            pl.BlockSpec((1, 1, 4 * D), layer3),           # b_mlp1
            pl.BlockSpec((1, 4 * D, D), layer3),           # w_mlp2 (bf16)
            pl.BlockSpec((1, 1, D), layer3),               # b_mlp2
            pl.BlockSpec((1, D), const2),                  # ln_post_g
            pl.BlockSpec((1, D), const2),                  # ln_post_b
            pl.BlockSpec((D, out_dim), const2),            # visual.proj (bf16)
        ],
        out_specs=pl.BlockSpec((BT, out_dim), const2),
        scratch_shapes=[pltpu.VMEM((BT * L, D), jnp.float32)],   # residual stream across layers
        compiler_params=pltpu.CompilerParams(dimension_semantics=("arbitrary",)),
    )(xs,
      params['ln_pre_g'], params['ln_pre_b'],
      st['prompts_padded'],
      st['ln1_g'], st['ln1_b'],
      st['w_qkv_bf16'], st['b_qkv'],
      st['w_out_bf16'], st['b_out'],
      st['ln2_g'], st['ln2_b'],
      st['w_mlp1_bf16'], st['b_mlp1'],
      st['w_mlp2_bf16'], st['b_mlp2'],
      params['ln_post_g'], params['ln_post_b'],
      params['proj_bf16'])


# ----------------------------- model glue -----------------------------

def event_encoder_forward(params, x, actual_event_length=None):
    """x: (B, C, T, H, W) float32 -> (B, T, output_dim).  (actual_event_length unused, as in PyTorch.)"""
    cfg = params['cfg']
    B, C, T, H, W = x.shape
    pH, pW = cfg['patch_size']
    D = cfg['width']
    P = cfg['num_event_modality_prompts'] if cfg['use_event_modality_prompts'] else 0

    # (B, C, T, H, W) -> (B*T, C, H, W) -> patch rows (layout plumbing, XLA)
    x = jnp.transpose(x, (0, 2, 1, 3, 4)).reshape(B * T, C, H, W)
    gh, gw = H // pH, W // pW
    nP = gh * gw
    patches = x.reshape(B * T, C, gh, pH, gw, pW)
    patches = jnp.transpose(patches, (0, 2, 4, 1, 3, 5)).reshape(B * T * nP, C * pH * pW)

    # Pallas call #1: conv1-as-matmul (bf16 MXU, single full-M block)
    xe = patch_embed(patches, params['conv1_w_bf16'], params['conv1_b0']).reshape(B * T, nP, D)

    # class token + positional + temporal embedding + prompt-slot padding (tiny one-time XLA ops)
    cls = jnp.broadcast_to(params['class_embedding'].reshape(1, 1, D), (B * T, 1, D))
    xs = jnp.concatenate([cls, xe], axis=1) + params['positional_embedding'][None]
    if cfg['use_temporal_encoding']:
        # '(b t) n m -> (b n) t m' + time_embed + back  ==  broadcast add over the T axis
        xs = (xs.reshape(B, T, nP + 1, D) + params['time_embed'][None, :, None, :]
              ).reshape(B * T, nP + 1, D)
    if P:
        # fixed padded sequence [cls | P prompt slots | patches]; slots overwritten in-kernel per layer
        xs = jnp.concatenate([xs[:, :1], jnp.zeros((B * T, P, D), xs.dtype), xs[:, 1:]], axis=1)

    # Pallas call #2: fused ln_pre + all transformer layers + ln_post + proj
    out = transformer_encode(params, xs, num_heads=cfg['num_heads'], num_prompts=P)
    return out.reshape(B, T, cfg['output_dim'])


# ----------------------------- parameters -----------------------------

def init_params(key, *, width=128, output_dim=128, num_layers=2, num_heads=4,
                patch_size=(16, 16), in_channels=3, num_patches=4,
                num_prompts=3, T=3):
    cfg = dict(width=width, output_dim=output_dim, num_heads=num_heads,
               patch_size=patch_size, num_patches=num_patches,
               num_event_modality_prompts=num_prompts,
               use_temporal_encoding=True, use_event_modality_prompts=True,
               use_cross_frame_prompts=False)

    keys = iter(jax.random.split(key, 128))

    def nrm(shape, std=0.02):
        return std * jax.random.normal(next(keys), shape, jnp.float32)

    def xavier(shape):
        limit = math.sqrt(6.0 / (shape[0] + shape[1]))
        return jax.random.uniform(next(keys), shape, jnp.float32, -limit, limit)

    D = width
    params = dict(cfg=cfg)
    params['conv1_w'] = xavier((in_channels * patch_size[0] * patch_size[1], D))
    params['conv1_b0'] = jnp.zeros((D,), jnp.float32)          # CLIP conv1 has bias=False
    params['class_embedding'] = nrm((D,))
    params['positional_embedding'] = nrm((num_patches + 1, D))
    params['time_embed'] = nrm((T, D))
    params['ln_pre_g'] = jnp.ones((D,), jnp.float32)
    params['ln_pre_b'] = jnp.zeros((D,), jnp.float32)

    val = math.sqrt(6.0 / float(3 * patch_size[0] * patch_size[1] + D))
    layers = []
    for _ in range(num_layers):
        lp = {}
        lp['event_modality_prompts'] = jax.random.uniform(
            next(keys), (num_prompts, D), jnp.float32, -val, val)
        lp['ln1_g'] = jnp.ones((D,), jnp.float32)
        lp['ln1_b'] = jnp.zeros((D,), jnp.float32)
        lp['w_qkv'] = xavier((D, 3 * D))
        lp['b_qkv'] = jnp.zeros((3 * D,), jnp.float32)
        lp['w_out'] = xavier((D, D))
        lp['b_out'] = jnp.zeros((D,), jnp.float32)
        lp['ln2_g'] = jnp.ones((D,), jnp.float32)
        lp['ln2_b'] = jnp.zeros((D,), jnp.float32)
        lp['w_mlp1'] = xavier((D, 4 * D))
        lp['b_mlp1'] = jnp.zeros((4 * D,), jnp.float32)
        lp['w_mlp2'] = xavier((4 * D, D))
        lp['b_mlp2'] = jnp.zeros((D,), jnp.float32)
        layers.append(lp)
    params['layers'] = layers

    params['ln_post_g'] = jnp.ones((D,), jnp.float32)
    params['ln_post_b'] = jnp.zeros((D,), jnp.float32)
    params['proj'] = (D ** -0.5) * jax.random.normal(next(keys), (D, output_dim), jnp.float32)
    return params


def preprocess_params(params):
    """One-time prep: stack per-layer weights along a layer axis, cast MXU operands to bf16,
    fold 1/sqrt(Dh) into the Q projection, pad prompts into (n_layers, L, D) slots."""
    cfg = params['cfg']
    D = cfg['width']
    P = cfg['num_event_modality_prompts'] if cfg['use_event_modality_prompts'] else 0
    L = cfg['num_patches'] + 1 + P
    scale = 1.0 / math.sqrt(D // cfg['num_heads'])

    p = dict(cfg=cfg)
    p['conv1_w_bf16'] = params['conv1_w'].astype(jnp.bfloat16)
    p['conv1_b0'] = params['conv1_b0']
    p['class_embedding'] = params['class_embedding']
    p['positional_embedding'] = params['positional_embedding']
    p['time_embed'] = params['time_embed']
    p['ln_pre_g'] = params['ln_pre_g'].reshape(1, D)
    p['ln_pre_b'] = params['ln_pre_b'].reshape(1, D)
    p['ln_post_g'] = params['ln_post_g'].reshape(1, D)
    p['ln_post_b'] = params['ln_post_b'].reshape(1, D)
    p['proj_bf16'] = params['proj'].astype(jnp.bfloat16)

    def stack(name):
        return jnp.stack([lp[name] for lp in params['layers']], axis=0)

    n_layers = len(params['layers'])
    w_qkv = stack('w_qkv').at[:, :, :D].multiply(scale)      # (nL, D, 3D), q-scale folded
    b_qkv = stack('b_qkv').at[:, :D].multiply(scale)         # (nL, 3D)

    st = {}
    padded = jnp.zeros((n_layers, L, D), jnp.float32)
    if P:
        padded = padded.at[:, 1:1 + P, :].set(stack('event_modality_prompts'))
    st['prompts_padded'] = padded
    st['ln1_g'] = stack('ln1_g').reshape(n_layers, 1, D)
    st['ln1_b'] = stack('ln1_b').reshape(n_layers, 1, D)
    st['w_qkv_bf16'] = w_qkv.astype(jnp.bfloat16)
    st['b_qkv'] = b_qkv.reshape(n_layers, 1, 3 * D)
    st['w_out_bf16'] = stack('w_out').astype(jnp.bfloat16)
    st['b_out'] = stack('b_out').reshape(n_layers, 1, D)
    st['ln2_g'] = stack('ln2_g').reshape(n_layers, 1, D)
    st['ln2_b'] = stack('ln2_b').reshape(n_layers, 1, D)
    st['w_mlp1_bf16'] = stack('w_mlp1').astype(jnp.bfloat16)
    st['b_mlp1'] = stack('b_mlp1').reshape(n_layers, 1, 4 * D)
    st['w_mlp2_bf16'] = stack('w_mlp2').astype(jnp.bfloat16)
    st['b_mlp2'] = stack('b_mlp2').reshape(n_layers, 1, D)
    p['stack'] = st
    return p


# ----------------------------- main -----------------------------

if __name__ == "__main__":
    # 16x16 patches on 32x32 input -> 2x2 grid: 4 patches + cls + 3 prompts = L = 8
    B, C, T, H, W = 2, 3, 3, 32, 32
    D, OUT = 128, 128                     # lane-dense (128-multiple) feature dims

    key = jax.random.PRNGKey(0)
    k_params, k_x = jax.random.split(key)

    params = init_params(k_params, width=D, output_dim=OUT, num_layers=2, num_heads=4,
                         patch_size=(16, 16), in_channels=C,
                         num_patches=(H // 16) * (W // 16), num_prompts=3, T=T)
    params = preprocess_params(params)

    x = jax.random.normal(k_x, (B, C, T, H, W), jnp.float32)
    actual_event_length = jnp.full((B,), T, jnp.int32)   # accepted but unused (as in PyTorch forward)

    out = event_encoder_forward(params, x, actual_event_length)
    out = jax.block_until_ready(out)
    assert out.shape == (B, T, params['cfg']['output_dim'])
    assert bool(jnp.all(jnp.isfinite(out)))
    print("KERNEL_OK")
</pallas_src>

<mosaic_0001>
module attributes {stable_mosaic.version = 11 : i64} {
  func.func @_patch_embed_kernel(%arg0: i32, %arg1: memref<24x768xf32, #tpu.memory_space<vmem>>, %arg2: memref<768x128xbf16, #tpu.memory_space<vmem>>, %arg3: memref<1x128xf32, #tpu.memory_space<vmem>>, %arg4: memref<24x128xf32, #tpu.memory_space<vmem>>) attributes {dimension_semantics = [#tpu.dimension_semantics<arbitrary>], iteration_bounds = array<i64: 1>, scalar_prefetch = 0 : i64, scratch_operands = 0 : i64, tpu.core_type = #tpu.core_type<tc>, window_params = [{pipeline_mode = #tpu.pipeline_mode<synchronous>, transform_indices = @transform_0, window_bounds = array<i64: 24, 768>}, {pipeline_mode = #tpu.pipeline_mode<synchronous>, transform_indices = @transform_1, window_bounds = array<i64: 768, 128>}, {pipeline_mode = #tpu.pipeline_mode<synchronous>, transform_indices = @transform_2, window_bounds = array<i64: 1, 128>}, {pipeline_mode = #tpu.pipeline_mode<synchronous>, transform_indices = @transform_3, window_bounds = array<i64: 24, 128>}]} {
    %c0 = arith.constant 0 : index
    %c0_0 = arith.constant 0 : index
    %0 = vector.load %arg1[%c0, %c0_0] : memref<24x768xf32, #tpu.memory_space<vmem>>, vector<24x768xf32>
    %1 = arith.truncf %0 : vector<24x768xf32> to vector<24x768xbf16>
    %c0_1 = arith.constant 0 : index
    %c0_2 = arith.constant 0 : index
    %2 = vector.load %arg2[%c0_1, %c0_2] : memref<768x128xbf16, #tpu.memory_space<vmem>>, vector<768x128xbf16>
    %cst = arith.constant dense<0.000000e+00> : vector<24x128xf32>
    %3 = tpu.matmul %1, %2, %cst {dimension_numbers = #tpu.dot_dimension_numbers<[1], [0], [0], [1], [0, 0, 1, 1], [], []>} : vector<24x768xbf16>, vector<768x128xbf16>, vector<24x128xf32> -> vector<24x128xf32>
    %c0_3 = arith.constant 0 : index
    %c0_4 = arith.constant 0 : index
    %4 = vector.load %arg3[%c0_3, %c0_4] : memref<1x128xf32, #tpu.memory_space<vmem>>, vector<1x128xf32>
    %5 = vector.broadcast %4 : vector<1x128xf32> to vector<24x128xf32>
    %6 = arith.addf %3, %5 : vector<24x128xf32>
    %c0_5 = arith.constant 0 : index
    %c0_6 = arith.constant 0 : index
    %7 = vector.load %arg4[%c0_5, %c0_6] : memref<24x128xf32, #tpu.memory_space<vmem>>, vector<24x128xf32>
    tpu.vector_store %arg4[%c0_5, %c0_6], %6 {strides = array<i32>} : memref<24x128xf32, #tpu.memory_space<vmem>>, vector<24x128xf32>,
    return
  }
  func.func @transform_0(%arg0: i32) -> (i32, i32) {
    %c0_i32 = arith.constant 0 : i32
    %c0_i32_0 = arith.constant 0 : i32
    %c0_i32_1 = arith.constant 0 : i32
    return %c0_i32, %c0_i32_0 : i32, i32
  }
  func.func @transform_1(%arg0: i32) -> (i32, i32) {
    %c0_i32 = arith.constant 0 : i32
    %c0_i32_0 = arith.constant 0 : i32
    %c0_i32_1 = arith.constant 0 : i32
    return %c0_i32, %c0_i32_0 : i32, i32
  }
  func.func @transform_2(%arg0: i32) -> (i32, i32) {
    %c0_i32 = arith.constant 0 : i32
    %c0_i32_0 = arith.constant 0 : i32
    %c0_i32_1 = arith.constant 0 : i32
    return %c0_i32, %c0_i32_0 : i32, i32
  }
  func.func @transform_3(%arg0: i32) -> (i32, i32) {
    %c0_i32 = arith.constant 0 : i32
    %c0_i32_0 = arith.constant 0 : i32
    %c0_i32_1 = arith.constant 0 : i32
    return %c0_i32, %c0_i32_0 : i32, i32
  }
}

</mosaic_0001>

<llo_original>
// kernel: tpu_custom_call.1
$region0: #{tpu_custom_call.1}
  #allocation0 [shape = 'u32[]', space=smem, size = 0x4, offset = 0x4, fixed_abs, tag = 'smem constant byte address 0x4 - core index']
  #allocation1 [shape = 'u32[72,128]{1,0:T(1,128)}', space=vmem, size = 0x9000, scoped, tag = 'internal scratch']
  %s0 = inlined_call_operand.hbm [shape: f32[24,768], index: 0, kind: input, shape index: {}]
  %s1 = inlined_call_operand.hbm [shape: bf16[768,128], index: 1, kind: input, shape index: {}]
  %s2 = inlined_call_operand.vmem [shape: f32[1,128], index: 2, kind: input, shape index: {}]
  %s3 = inlined_call_operand.hbm [shape: f32[24,128], index: 3, kind: output, shape index: {}]
  %s4 = sld [smem:[#allocation0]]
  $region30: #{tpu_custom_call.1} parent=0
    _
  %s6 = ssub.s32 1, %s4
  %s7 = scalar_select 0, %s6, %s4
  $region1: #{tpu_custom_call.1} parent=0
    #allocation2 [shape = 'u8[73728]{0}', space=vmem, size = 0x12000, scoped, tag = 'input window, operand 0, single buffered']
    #allocation3 [shape = 's32[1]{0}', space=sflag, size = 0x4, scoped, tag = 'scoped memory for tpu_custom_call.1']
    #allocation4 [shape = 's32[1]{0}', space=sflag, size = 0x4, scoped, tag = 'scoped memory for tpu_custom_call.1']
    #allocation5 [shape = 'u8[196608]{0}', space=vmem, size = 0x30000, scoped, tag = 'input window, operand 1, single buffered']
    #allocation6 [shape = 's32[1]{0}', space=sflag, size = 0x4, scoped, tag = 'scoped memory for tpu_custom_call.1']
    #allocation7 [shape = 'u8[12288]{0}', space=vmem, size = 0x3000, scoped, tag = 'output window, operand 0, single buffered']
    %8 = vsyncpa [#allocation3], 0
    %9 = vsyncpa [#allocation6], 0
    %10 = vsyncpa [#allocation4], 0
    // Predicated region
    $region2: #{tpu_custom_call.1} parent=1 // pred_check
      _
    $region3: #{tpu_custom_call.1} parent=1 // pred_check_branch
      %12 = sbr.rel (0) target = $region5
    $region4: #{tpu_custom_call.1} parent=1 // pred_region
      %14 = vsyncadd [#allocation3], 0
      %s15 = sshll.u32 %s0, 4
      %s16 = int_to_ptr.hbm [resolvable:$true] %s15
      %s17 = sshll.u32 [#allocation2], 4
      %s18 = int_to_ptr.vmem [resolvable:$true] %s17
      %23 = dma.hbm_to_vmem [thread:$0]  %s16, 2304, %s18, [#allocation3], 768, 768, 48
    $region5: #{tpu_custom_call.1} parent=1 // pred_fallthru
      _
    // Predicated region
    $region6: #{tpu_custom_call.1} parent=1 // pred_check
      _
    $region7: #{tpu_custom_call.1} parent=1 // pred_check_branch
      %25 = sbr.rel (0) target = $region9
    $region8: #{tpu_custom_call.1} parent=1 // pred_region
      %27 = vsyncadd [#allocation6], 0
      %s28 = sshll.u32 %s1, 4
      %s29 = int_to_ptr.hbm [resolvable:$true] %s28
      %s30 = sshll.u32 [#allocation5], 4
      %s31 = int_to_ptr.vmem [resolvable:$true] %s30
      %36 = dma.hbm_to_vmem [thread:$0]  %s29, 6144, %s31, [#allocation6], 64, 64, 4
    $region9: #{tpu_custom_call.1} parent=1 // pred_fallthru
      _
    // Predicated region
    $region10: #{tpu_custom_call.1} parent=1 // pred_check
      _
    $region11: #{tpu_custom_call.1} parent=1 // pred_check_branch
      %38 = sbr.rel (0) target = $region13
    $region12: #{tpu_custom_call.1} parent=1 // pred_region
      _
    $region13: #{tpu_custom_call.1} parent=1 // pred_fallthru
      _
    // Predicated region
    $region14: #{tpu_custom_call.1} parent=1 // pred_check
      _
    $region15: #{tpu_custom_call.1} parent=1 // pred_check_branch
      %40 = sbr.rel (0) target = $region17
    $region16: #{tpu_custom_call.1} parent=1 // pred_region
      %42 = dma.done [#allocation3], 2304
    $region17: #{tpu_custom_call.1} parent=1 // pred_fallthru
      _
    // Predicated region
    $region18: #{tpu_custom_call.1} parent=1 // pred_check
      _
    $region19: #{tpu_custom_call.1} parent=1 // pred_check_branch
      %44 = sbr.rel (0) target = $region21
    $region20: #{tpu_custom_call.1} parent=1 // pred_region
      %46 = dma.done [#allocation6], 6144
    $region21: #{tpu_custom_call.1} parent=1 // pred_fallthru
      _
    %v47 = vld [vmem:[#allocation2] sm:$0xff]
    %v48 = vld [vmem:[#allocation2 + $0x8] sm:$0xff]
    %v49 = vld [vmem:[#allocation2 + $0x10] sm:$0xff]
    %v50 = vld [vmem:[#allocation2 + $0x18] sm:$0xff]
    %v51 = vld [vmem:[#allocation2 + $0x20] sm:$0xff]
    %v52 = vld [vmem:[#allocation2 + $0x28] sm:$0xff]
    %v53 = vld [vmem:[#allocation2 + $0x30] sm:$0xff]
    %v54 = vld [vmem:[#allocation2 + $0x38] sm:$0xff]
    %v55 = vld [vmem:[#allocation2 + $0x40] sm:$0xff]
    %v56 = vld [vmem:[#allocation2 + $0x48] sm:$0xff]
    %v57 = vld [vmem:[#allocation2 + $0x50] sm:$0xff]
    %v58 = vld [vmem:[#allocation2 + $0x58] sm:$0xff]
    %v59 = vld [vmem:[#allocation2 + $0x60] sm:$0xff]
    %v60 = vld [vmem:[#allocation2 + $0x68] sm:$0xff]
    %v61 = vld [vmem:[#allocation2 + $0x70] sm:$0xff]
    %v62 = vld [vmem:[#allocation2 + $0x78] sm:$0xff]
    %v63 = vld [vmem:[#allocation2 + $0x80] sm:$0xff]
    %v64 = vld [vmem:[#allocation2 + $0x88] sm:$0xff]
    %v65 = vpack.c.bf16 %v53, %v47
    %v66 = vpack.c.bf16 %v54, %v48
    %v67 = vpack.c.bf16 %v55, %v49
    %v68 = vpack.c.bf16 %v56, %v50
    %v69 = vpack.c.bf16 %v57, %v51
    %v70 = vpack.c.bf16 %v58, %v52
    %v71 = vpack.c.bf16 %v59, %v59
    %v72 = vpack.c.bf16 %v60, %v60
    %v73 = vpack.c.bf16 %v61, %v61
    %v74 = vpack.c.bf16 %v62, %v62
    %v75 = vpack.c.bf16 %v63, %v63
    %v76 = vpack.c.bf16 %v64, %v64
    %v77 = vld [vmem:[#allocation5] sm:$0xf]
    %v78 = vld [vmem:[#allocation5 + $0x4] sm:$0xf]
    %v79 = vld [vmem:[#allocation5 + $0x8] sm:$0xf]
    %v80 = vld [vmem:[#allocation5 + $0xc] sm:$0xf]
    %v81 = vld [vmem:[#allocation5 + $0x10] sm:$0xf]
    %v82 = vld [vmem:[#allocation5 + $0x14] sm:$0xf]
    %v83 = vld [vmem:[#allocation5 + $0x18] sm:$0xf]
    %v84 = vld [vmem:[#allocation5 + $0x1c] sm:$0xf]
    %v85 = vld [vmem:[#allocation5 + $0x20] sm:$0xf]
    %v86 = vld [vmem:[#allocation5 + $0x24] sm:$0xf]
    %v87 = vld [vmem:[#allocation5 + $0x28] sm:$0xf]
    %v88 = vld [vmem:[#allocation5 + $0x2c] sm:$0xf]
    %v89 = vld [vmem:[#allocation5 + $0x30] sm:$0xf]
    %v90 = vld [vmem:[#allocation5 + $0x34] sm:$0xf]
    %v91 = vld [vmem:[#allocation5 + $0x38] sm:$0xf]
    %v92 = vld [vmem:[#allocation5 + $0x3c] sm:$0xf]
    %v93 = vld [vmem:[#allocation5 + $0x40] sm:$0xf]
    %v94 = vld [vmem:[#allocation5 + $0x44] sm:$0xf]
    %v95 = vld [vmem:[#allocation5 + $0x48] sm:$0xf]
    %v96 = vld [vmem:[#allocation5 + $0x4c] sm:$0xf]
    %v97 = vld [vmem:[#allocation5 + $0x50] sm:$0xf]
    %v98 = vld [vmem:[#allocation5 + $0x54] sm:$0xf]
    %v99 = vld [vmem:[#allocation5 + $0x58] sm:$0xf]
    %v100 = vld [vmem:[#allocation5 + $0x5c] sm:$0xf]
    %v101 = vld [vmem:[#allocation5 + $0x60] sm:$0xf]
    %v102 = vld [vmem:[#allocation5 + $0x64] sm:$0xf]
    %v103 = vld [vmem:[#allocation5 + $0x68] sm:$0xf]
    %v104 = vld [vmem:[#allocation5 + $0x6c] sm:$0xf]
    %v105 = vld [vmem:[#allocation5 + $0x70] sm:$0xf]
    %v106 = vld [vmem:[#allocation5 + $0x74] sm:$0xf]
    %v107 = vld [vmem:[#allocation5 + $0x78] sm:$0xf]
    %v108 = vld [vmem:[#allocation5 + $0x7c] sm:$0xf]
    %v109 = vld [vmem:[#allocation5 + $0x80] sm:$0xf]
    %v110 = vld [vmem:[#allocation5 + $0x84] sm:$0xf]
    %v111 = vld [vmem:[#allocation5 + $0x88] sm:$0xf]
    %v112 = vld [vmem:[#allocation5 + $0x8c] sm:$0xf]
    %v113 = vld [vmem:[#allocation5 + $0x90] sm:$0xf]
    %v114 = vld [vmem:[#allocation5 + $0x94] sm:$0xf]
    %v115 = vld [vmem:[#allocation5 + $0x98] sm:$0xf]
    %v116 = vld [vmem:[#allocation5 + $0x9c] sm:$0xf]
    %v117 = vld [vmem:[#allocation5 + $0xa0] sm:$0xf]
    %v118 = vld [vmem:[#allocation5 + $0xa4] sm:$0xf]
    %v119 = vld [vmem:[#allocation5 + $0xa8] sm:$0xf]
    %v120 = vld [vmem:[#allocation5 + $0xac] sm:$0xf]
    %v121 = vld [vmem:[#allocation5 + $0xb0] sm:$0xf]
    %v122 = vld [vmem:[#allocation5 + $0xb4] sm:$0xf]
    %v123 = vld [vmem:[#allocation5 + $0xb8] sm:$0xf]
    %v124 = vld [vmem:[#allocation5 + $0xbc] sm:$0xf]
    %v125 = vld [vmem:[#allocation5 + $0xc0] sm:$0xf]
    %v126 = vld [vmem:[#allocation5 + $0xc4] sm:$0xf]
    %v127 = vld [vmem:[#allocation5 + $0xc8] sm:$0xf]
    %v128 = vld [vmem:[#allocation5 + $0xcc] sm:$0xf]
    %v129 = vld [vmem:[#allocation5 + $0xd0] sm:$0xf]
    %v130 = vld [vmem:[#allocation5 + $0xd4] sm:$0xf]
    %v131 = vld [vmem:[#allocation5 + $0xd8] sm:$0xf]
    %v132 = vld [vmem:[#allocation5 + $0xdc] sm:$0xf]
    %v133 = vld [vmem:[#allocation5 + $0xe0] sm:$0xf]
    %v134 = vld [vmem:[#allocation5 + $0xe4] sm:$0xf]
    %v135 = vld [vmem:[#allocation5 + $0xe8] sm:$0xf]
    %v136 = vld [vmem:[#allocation5 + $0xec] sm:$0xf]
    %v137 = vld [vmem:[#allocation5 + $0xf0] sm:$0xf]
    %v138 = vld [vmem:[#allocation5 + $0xf4] sm:$0xf]
    %v139 = vld [vmem:[#allocation5 + $0xf8] sm:$0xf]
    %v140 = vld [vmem:[#allocation5 + $0xfc] sm:$0xf]
    %v141 = vld [vmem:[#allocation5 + $0x100] sm:$0xf]
    %v142 = vld [vmem:[#allocation5 + $0x104] sm:$0xf]
    %v143 = vld [vmem:[#allocation5 + $0x108] sm:$0xf]
    %v144 = vld [vmem:[#allocation5 + $0x10c] sm:$0xf]
    %v145 = vld [vmem:[#allocation5 + $0x110] sm:$0xf]
    %v146 = vld [vmem:[#allocation5 + $0x114] sm:$0xf]
    %v147 = vld [vmem:[#allocation5 + $0x118] sm:$0xf]
    %v148 = vld [vmem:[#allocation5 + $0x11c] sm:$0xf]
    %v149 = vld [vmem:[#allocation5 + $0x120] sm:$0xf]
    %v150 = vld [vmem:[#allocation5 + $0x124] sm:$0xf]
    %v151 = vld [vmem:[#allocation5 + $0x128] sm:$0xf]
    %v152 = vld [vmem:[#allocation5 + $0x12c] sm:$0xf]
    %v153 = vld [vmem:[#allocation5 + $0x130] sm:$0xf]
    %v154 = vld [vmem:[#allocation5 + $0x134] sm:$0xf]
    %v155 = vld [vmem:[#allocation5 + $0x138] sm:$0xf]
    %v156 = vld [vmem:[#allocation5 + $0x13c] sm:$0xf]
    %v157 = vld [vmem:[#allocation5 + $0x140] sm:$0xf]
    %v158 = vld [vmem:[#allocation5 + $0x144] sm:$0xf]
    %v159 = vld [vmem:[#allocation5 + $0x148] sm:$0xf]
    %v160 = vld [vmem:[#allocation5 + $0x14c] sm:$0xf]
    %v161 = vld [vmem:[#allocation5 + $0x150] sm:$0xf]
    %v162 = vld [vmem:[#allocation5 + $0x154] sm:$0xf]
    %v163 = vld [vmem:[#allocation5 + $0x158] sm:$0xf]
    %v164 = vld [vmem:[#allocation5 + $0x15c] sm:$0xf]
    %v165 = vld [vmem:[#allocation5 + $0x160] sm:$0xf]
    %v166 = vld [vmem:[#allocation5 + $0x164] sm:$0xf]
    %v167 = vld [vmem:[#allocation5 + $0x168] sm:$0xf]
    %v168 = vld [vmem:[#allocation5 + $0x16c] sm:$0xf]
    %v169 = vld [vmem:[#allocation5 + $0x170] sm:$0xf]
    %v170 = vld [vmem:[#allocation5 + $0x174] sm:$0xf]
    %v171 = vld [vmem:[#allocation5 + $0x178] sm:$0xf]
    %v172 = vld [vmem:[#allocation5 + $0x17c] sm:$0xf]
    %v173 = vld [vmem:[%s2] sm:$0x1]
    %v175 = vperm.slane %v173, 0
    %v273 = vunpack.c.l.b16 %v77
    %v274 = vunpack.c.l.b16 %v78
    %v275 = vunpack.c.l.b16 %v79
    %v276 = vunpack.c.l.b16 %v80
    %v277 = vunpack.c.l.b16 %v81
    %v278 = vunpack.c.l.b16 %v82
    %v279 = vunpack.c.l.b16 %v83
    %v280 = vunpack.c.l.b16 %v84
    %v281 = vunpack.c.l.b16 %v85
    %v282 = vunpack.c.l.b16 %v86
    %v283 = vunpack.c.l.b16 %v87
    %v284 = vunpack.c.l.b16 %v88
    %v285 = vunpack.c.l.b16 %v89
    %v286 = vunpack.c.l.b16 %v90
    %v287 = vunpack.c.l.b16 %v91
    %v288 = vunpack.c.l.b16 %v92
    %v289 = vunpack.c.l.b16 %v93
    %v290 = vunpack.c.l.b16 %v94
    %v291 = vunpack.c.l.b16 %v95
    %v292 = vunpack.c.l.b16 %v96
    %v293 = vunpack.c.l.b16 %v97
    %v294 = vunpack.c.l.b16 %v98
    %v295 = vunpack.c.l.b16 %v99
    %v296 = vunpack.c.l.b16 %v100
    %v297 = vunpack.c.l.b16 %v101
    %v298 = vunpack.c.l.b16 %v102
    %v299 = vunpack.c.l.b16 %v103
    %v300 = vunpack.c.l.b16 %v104
    %v301 = vunpack.c.l.b16 %v105
    %v302 = vunpack.c.l.b16 %v106
    %v303 = vunpack.c.l.b16 %v107
    %v304 = vunpack.c.l.b16 %v108
    %v305 = vunpack.c.l.b16 %v109
    %v306 = vunpack.c.l.b16 %v110
    %v307 = vunpack.c.l.b16 %v111
    %v308 = vunpack.c.l.b16 %v112
    %v309 = vunpack.c.l.b16 %v113
    %v310 = vunpack.c.l.b16 %v114
    %v311 = vunpack.c.l.b16 %v115
    %v312 = vunpack.c.l.b16 %v116
    %v313 = vunpack.c.l.b16 %v117
    %v314 = vunpack.c.l.b16 %v118
    %v315 = vunpack.c.l.b16 %v119
    %v316 = vunpack.c.l.b16 %v120
    %v317 = vunpack.c.l.b16 %v121
    %v318 = vunpack.c.l.b16 %v122
    %v319 = vunpack.c.l.b16 %v123
    %v320 = vunpack.c.l.b16 %v124
    %v321 = vunpack.c.l.b16 %v125
    %v322 = vunpack.c.l.b16 %v126
    %v323 = vunpack.c.l.b16 %v127
    %v324 = vunpack.c.l.b16 %v128
    %v325 = vunpack.c.l.b16 %v129
    %v326 = vunpack.c.l.b16 %v130
    %v327 = vunpack.c.l.b16 %v131
    %v328 = vunpack.c.l.b16 %v132
    %v329 = vunpack.c.l.b16 %v133
    %v330 = vunpack.c.l.b16 %v134
    %v331 = vunpack.c.l.b16 %v135
    %v332 = vunpack.c.l.b16 %v136
    %v333 = vunpack.c.l.b16 %v137
    %v334 = vunpack.c.l.b16 %v138
    %v335 = vunpack.c.l.b16 %v139
    %v336 = vunpack.c.l.b16 %v140
    %v337 = vunpack.c.l.b16 %v141
    %v338 = vunpack.c.l.b16 %v142
    %v339 = vunpack.c.l.b16 %v143
    %v340 = vunpack.c.l.b16 %v144
    %v341 = vunpack.c.l.b16 %v145
    %v342 = vunpack.c.l.b16 %v146
    %v343 = vunpack.c.l.b16 %v147
    %v344 = vunpack.c.l.b16 %v148
    %v345 = vunpack.c.l.b16 %v149
    %v346 = vunpack.c.l.b16 %v150
    %v347 = vunpack.c.l.b16 %v151
    %v348 = vunpack.c.l.b16 %v152
    %v349 = vunpack.c.l.b16 %v153
    %v350 = vunpack.c.l.b16 %v154
    %v351 = vunpack.c.l.b16 %v155
    %v352 = vunpack.c.l.b16 %v156
    %v353 = vunpack.c.l.b16 %v157
    %v354 = vunpack.c.l.b16 %v158
    %v355 = vunpack.c.l.b16 %v159
    %v356 = vunpack.c.l.b16 %v160
    %v357 = vunpack.c.l.b16 %v161
    %v358 = vunpack.c.l.b16 %v162
    %v359 = vunpack.c.l.b16 %v163
    %v360 = vunpack.c.l.b16 %v164
    %v361 = vunpack.c.l.b16 %v165
    %v362 = vunpack.c.l.b16 %v166
    %v363 = vunpack.c.l.b16 %v167
    %v364 = vunpack.c.l.b16 %v168
    %v365 = vunpack.c.l.b16 %v169
    %v366 = vunpack.c.l.b16 %v170
    %v367 = vunpack.c.l.b16 %v171
    %v368 = vunpack.c.l.b16 %v172
    %v369 = vpack.c.b16 %v274, %v273
    %v370 = vpack.c.b16 %v276, %v275
    %v371 = vpack.c.b16 %v278, %v277
    %v372 = vpack.c.b16 %v280, %v279
    %v373 = vpack.c.b16 %v282, %v281
    %v374 = vpack.c.b16 %v284, %v283
    %v375 = vpack.c.b16 %v286, %v285
    %v376 = vpack.c.b16 %v288, %v287
    %v377 = vpack.c.b16 %v290, %v289
    %v378 = vpack.c.b16 %v292, %v291
    %v379 = vpack.c.b16 %v294, %v293
    %v380 = vpack.c.b16 %v296, %v295
    %v381 = vpack.c.b16 %v298, %v297
    %v382 = vpack.c.b16 %v300, %v299
    %v383 = vpack.c.b16 %v302, %v301
    %v384 = vpack.c.b16 %v304, %v303
    %v385 = vpack.c.b16 %v306, %v305
    %v386 = vpack.c.b16 %v308, %v307
    %v387 = vpack.c.b16 %v310, %v309
    %v388 = vpack.c.b16 %v312, %v311
    %v389 = vpack.c.b16 %v314, %v313
    %v390 = vpack.c.b16 %v316, %v315
    %v391 = vpack.c.b16 %v318, %v317
    %v392 = vpack.c.b16 %v320, %v319
    %v393 = vpack.c.b16 %v322, %v321
    %v394 = vpack.c.b16 %v324, %v323
    %v395 = vpack.c.b16 %v326, %v325
    %v396 = vpack.c.b16 %v328, %v327
    %v397 = vpack.c.b16 %v330, %v329
    %v398 = vpack.c.b16 %v332, %v331
    %v399 = vpack.c.b16 %v334, %v333
    %v400 = vpack.c.b16 %v336, %v335
    %v401 = vpack.c.b16 %v338, %v337
    %v402 = vpack.c.b16 %v340, %v339
    %v403 = vpack.c.b16 %v342, %v341
    %v404 = vpack.c.b16 %v344, %v343
    %v405 = vpack.c.b16 %v346, %v345
    %v406 = vpack.c.b16 %v348, %v347
    %v407 = vpack.c.b16 %v350, %v349
    %v408 = vpack.c.b16 %v352, %v351
    %v409 = vpack.c.b16 %v354, %v353
    %v410 = vpack.c.b16 %v356, %v355
    %v411 = vpack.c.b16 %v358, %v357
    %v412 = vpack.c.b16 %v360, %v359
    %v413 = vpack.c.b16 %v362, %v361
    %v414 = vpack.c.b16 %v364, %v363
    %v415 = vpack.c.b16 %v366, %v365
    %v416 = vpack.c.b16 %v368, %v367
    %465 = vmatpush.bf16.msra.mxu0 %v376
    %466 = vmatpush.bf16.msra.mxu0 %v375
    %467 = vmatpush.bf16.msra.mxu0 %v374
    %468 = vmatpush.bf16.msra.mxu0 %v373
    %469 = vmatpush.bf16.msra.mxu0 %v372
    %470 = vmatpush.bf16.msra.mxu0 %v371
    %471 = vmatpush.bf16.msra.mxu0 %v370
    %472 = vmatpush.bf16.msra.mxu0 %v369
    %473 = vmatmul.bf16.gmra.mxu0 %v65
    %v474 = vpop.f32.mrf.mxu0
    %v475 = vadd.f32 %v175, %v474
    %v476 = vpop.f32.mrf.mxu0
    %v477 = vadd.f32 %v175, %v476
    %478 = vmatmul.bf16.gmra.mxu0 %v71
    %v479 = vpop.f32.mrf.mxu0
    %v480 = vadd.f32 %v175, %v479
    %v481 = vpop.f32.mrf.mxu0
    %482 = vdwg.mxu0
    %483 = vmatpush.bf16.msra.mxu0 %v384
    %484 = vmatpush.bf16.msra.mxu0 %v383
    %485 = vmatpush.bf16.msra.mxu0 %v382
    %486 = vmatpush.bf16.msra.mxu0 %v381
    %487 = vmatpush.bf16.msra.mxu0 %v380
    %488 = vmatpush.bf16.msra.mxu0 %v379
    %489 = vmatpush.bf16.msra.mxu0 %v378
    %490 = vmatpush.bf16.msra.mxu0 %v377
    %491 = vmatmul.bf16.gmra.mxu0 %v66
    %v492 = vpop.f32.mrf.mxu0
    %v493 = vadd.f32 %v475, %v492
    %v494 = vpop.f32.mrf.mxu0
    %v495 = vadd.f32 %v477, %v494
    %496 = vmatmul.bf16.gmra.mxu0 %v72
    %v497 = vpop.f32.mrf.mxu0
    %v498 = vadd.f32 %v480, %v497
    %v499 = vpop.f32.mrf.mxu0
    %500 = vdwg.mxu0
    %501 = vmatpush.bf16.msra.mxu0 %v392
    %502 = vmatpush.bf16.msra.mxu0 %v391
    %503 = vmatpush.bf16.msra.mxu0 %v390
    %504 = vmatpush.bf16.msra.mxu0 %v389
    %505 = vmatpush.bf16.msra.mxu0 %v388
    %506 = vmatpush.bf16.msra.mxu0 %v387
    %507 = vmatpush.bf16.msra.mxu0 %v386
    %508 = vmatpush.bf16.msra.mxu0 %v385
    %509 = vmatmul.bf16.gmra.mxu0 %v67
    %v510 = vpop.f32.mrf.mxu0
    %v511 = vadd.f32 %v493, %v510
    %v512 = vpop.f32.mrf.mxu0
    %v513 = vadd.f32 %v495, %v512
    %514 = vmatmul.bf16.gmra.mxu0 %v73
    %v515 = vpop.f32.mrf.mxu0
    %v516 = vadd.f32 %v498, %v515
    %v517 = vpop.f32.mrf.mxu0
    %518 = vdwg.mxu0
    %519 = vmatpush.bf16.msra.mxu0 %v400
    %520 = vmatpush.bf16.msra.mxu0 %v399
    %521 = vmatpush.bf16.msra.mxu0 %v398
    %522 = vmatpush.bf16.msra.mxu0 %v397
    %523 = vmatpush.bf16.msra.mxu0 %v396
    %524 = vmatpush.bf16.msra.mxu0 %v395
    %525 = vmatpush.bf16.msra.mxu0 %v394
    %526 = vmatpush.bf16.msra.mxu0 %v393
    %527 = vmatmul.bf16.gmra.mxu0 %v68
    %v528 = vpop.f32.mrf.mxu0
    %v529 = vadd.f32 %v511, %v528
    %v530 = vpop.f32.mrf.mxu0
    %v531 = vadd.f32 %v513, %v530
    %532 = vmatmul.bf16.gmra.mxu0 %v74
    %v533 = vpop.f32.mrf.mxu0
    %v534 = vadd.f32 %v516, %v533
    %v535 = vpop.f32.mrf.mxu0
    %536 = vdwg.mxu0
    %537 = vmatpush.bf16.msra.mxu0 %v408
    %538 = vmatpush.bf16.msra.mxu0 %v407
    %539 = vmatpush.bf16.msra.mxu0 %v406
    %540 = vmatpush.bf16.msra.mxu0 %v405
    %541 = vmatpush.bf16.msra.mxu0 %v404
    %542 = vmatpush.bf16.msra.mxu0 %v403
    %543 = vmatpush.bf16.msra.mxu0 %v402
    %544 = vmatpush.bf16.msra.mxu0 %v401
    %545 = vmatmul.bf16.gmra.mxu0 %v69
    %v546 = vpop.f32.mrf.mxu0
    %v547 = vadd.f32 %v529, %v546
    %v548 = vpop.f32.mrf.mxu0
    %v549 = vadd.f32 %v531, %v548
    %550 = vmatmul.bf16.gmra.mxu0 %v75
    %v551 = vpop.f32.mrf.mxu0
    %v552 = vadd.f32 %v534, %v551
    %v553 = vpop.f32.mrf.mxu0
    %554 = vdwg.mxu0
    %555 = vmatpush.bf16.msra.mxu0 %v416
    %556 = vmatpush.bf16.msra.mxu0 %v415
    %557 = vmatpush.bf16.msra.mxu0 %v414
    %558 = vmatpush.bf16.msra.mxu0 %v413
    %559 = vmatpush.bf16.msra.mxu0 %v412
    %560 = vmatpush.bf16.msra.mxu0 %v411
    %561 = vmatpush.bf16.msra.mxu0 %v410
    %562 = vmatpush.bf16.msra.mxu0 %v409
    %563 = vmatmul.bf16.gmra.mxu0 %v70
    %v564 = vpop.f32.mrf.mxu0
    %v565 = vadd.f32 %v547, %v564
    %v566 = vpop.f32.mrf.mxu0
    %v567 = vadd.f32 %v549, %v566
    %568 = vmatmul.bf16.gmra.mxu0 %v76
    %v569 = vpop.f32.mrf.mxu0
    %v570 = vadd.f32 %v552, %v569
    %v571 = vpop.f32.mrf.mxu0
    %572 = vdwg.mxu0
    %573 = vst [vmem:[#allocation7] sm:$0xff] %v565
    %574 = vst [vmem:[#allocation7 + $0x8] sm:$0xff] %v567
    %575 = vst [vmem:[#allocation7 + $0x10] sm:$0xff] %v570
    // Predicated region
    $region22: #{tpu_custom_call.1} parent=1 // pred_check
      _
    $region23: #{tpu_custom_call.1} parent=1 // pred_check_branch
      %577 = sbr.rel (0) target = $region25
    $region24: #{tpu_custom_call.1} parent=1 // pred_region
      %579 = vsyncadd [#allocation4], 0
      %s580 = sshll.u32 [#allocation7], 4
      %s581 = int_to_ptr.vmem [resolvable:$true] %s580
      %s582 = sshll.u32 %s3, 4
      %s583 = int_to_ptr.hbm [resolvable:$true] %s582
      %588 = dma.vmem_to_hbm [thread:$0]  %s581, 384, %s583, [#allocation4], 128, 128, 8
    $region25: #{tpu_custom_call.1} parent=1 // pred_fallthru
      _
    // Predicated region
    $region26: #{tpu_custom_call.1} parent=1 // pred_check
      _
    $region27: #{tpu_custom_call.1} parent=1 // pred_check_branch
      %590 = sbr.rel (0) target = $region29
    $region28: #{tpu_custom_call.1} parent=1 // pred_region
      %592 = dma.done [#allocation4], 384
    $region29: #{tpu_custom_call.1} parent=1 // pred_fallthru
      _
    %593 = vsyncpa [#allocation3], 1
    %594 = vsyncpa [#allocation6], 1
    %595 = vsyncpa [#allocation4], 1

</llo_original>
